<compile_context>
chip_gen: v6e
topology: v6e:2x2x1
jax: 0.10.0
libtpu: 0.0.40
codegen_flags: <defaults>
</compile_context>

<pallas_src>
import jax
import jax.numpy as jnp
from jax.experimental import pallas as pl
from jax.experimental.pallas import tpu as pltpu

C1 = 0.01 ** 2
C2 = 0.03 ** 2


def _make_ssim_kernel(use_roll):
    """Kernel over one (P, H, W) block of planes. All ops are batched 3-D."""

    def kernel(x_ref, y_ref, o_ref):
        _, H, W = x_ref.shape
        inv9 = jnp.float32(1.0 / 9.0)

        if use_roll:
            # Hoisted boundary masks: built once per grid step (JAX does not
            # CSE broadcasts, so never re-create these inside the pool calls).
            col_idx = jax.lax.broadcasted_iota(jnp.int32, (1, 1, W), 2)
            mask_c0 = col_idx == 0
            mask_cW = col_idx == W - 1
            row_idx = jax.lax.broadcasted_iota(jnp.int32, (1, H, 1), 1)
            mask_r0 = row_idx == 0
            mask_rH = row_idx == H - 1

            def row3(a):
                # Interior neighbors via XLU sublane rotations. Direction
                # agnostic: roll(1) + roll(H-1) == prev + next in the interior.
                s = a + pltpu.roll(a, 1, axis=1) + pltpu.roll(a, H - 1, axis=1)
                s = jnp.where(mask_r0, a + 2.0 * a[:, 1:2, :], s)
                s = jnp.where(mask_rH, a + 2.0 * a[:, H - 2:H - 1, :], s)
                return s

            def col3(b):
                s = b + pltpu.roll(b, 1, axis=2) + pltpu.roll(b, W - 1, axis=2)
                s = jnp.where(mask_c0, b + 2.0 * b[:, :, 1:2], s)
                s = jnp.where(mask_cW, b + 2.0 * b[:, :, W - 2:W - 1], s)
                return s
        else:
            # Safe path for small / lane-unaligned widths (pyramid levels):
            # same-width concatenation taps, no (H+2, W+2) misaligned buffer.
            def row3(a):
                up = jnp.concatenate([a[:, 1:2, :], a[:, : H - 1, :]], axis=1)
                dn = jnp.concatenate([a[:, 1:H, :], a[:, H - 2:H - 1, :]], axis=1)
                return up + a + dn

            def col3(b):
                lt = jnp.concatenate([b[:, :, 1:2], b[:, :, : W - 1]], axis=2)
                rt = jnp.concatenate([b[:, :, 1:W], b[:, :, W - 2:W - 1]], axis=2)
                return lt + b + rt

        def pool3(a):
            # Separable 3x3 reflected average pool: 6 adds instead of 9,
            # one shifted intermediate live at a time.
            return col3(row3(a)) * inv9

        x = x_ref[...].astype(jnp.float32)
        y = y_ref[...].astype(jnp.float32)

        mu_x = pool3(x)
        mu_y = pool3(y)
        # Reuse the mu products (don't rely on Mosaic CSE).
        mux2 = mu_x * mu_x
        muy2 = mu_y * mu_y
        muxy = mu_x * mu_y
        sigma_x = pool3(x * x) - mux2
        sigma_y = pool3(y * y) - muy2
        sigma_xy = pool3(x * y) - muxy

        ssim_n = (2.0 * muxy + C1) * (2.0 * sigma_xy + C2)
        ssim_d = (mux2 + muy2 + C1) * (sigma_x + sigma_y + C2)

        # EUP approx reciprocal + one Newton-Raphson step keeps 1e-5 accuracy.
        r = pl.reciprocal(ssim_d, approx=True)
        r = r * (2.0 - ssim_d * r)

        out = jnp.clip((1.0 - ssim_n * r) * 0.5, 0.0, 1.0)
        o_ref[...] = out.astype(o_ref.dtype)

    return kernel


def _plane_batch_and_vmem(n_planes, H, W, itemsize):
    """Generation-aware planes-per-step and scoped VMEM limit."""
    try:
        vmem_cap = int(pltpu.get_tpu_info().vmem_capacity_bytes)
    except Exception:  # narrow fallback: assume the smallest generation (v7x)
        vmem_cap = 64 * 1024 * 1024

    if vmem_cap >= 100 * 1024 * 1024:          # v5e / v6e: 128 MiB physical
        footprint_budget = 40 * 1024 * 1024
        vmem_limit = 96 * 1024 * 1024
    else:                                      # v7x: 64 MiB physical
        footprint_budget = 20 * 1024 * 1024
        vmem_limit = 40 * 1024 * 1024

    # Per-plane footprint: double-buffered x/y/out + ~12 live f32 temporaries.
    per_plane = H * W * (3 * 2 * itemsize + 12 * 4)
    p = max(1, footprint_budget // per_plane)
    # Keep >= 2 grid steps: lets the 'parallel' axis shard across v7x's two
    # TensorCores and gives the DMA pipeline something to overlap.
    if n_planes >= 2:
        p = min(p, max(1, n_planes // 2))
    p = min(p, n_planes)
    return int(p), int(vmem_limit)


def _ssim_pallas_impl(x, y):
    N, C, H, W = x.shape
    assert H >= 2 and W >= 2, "SSIM with ReflectionPad2d(1) needs H, W >= 2"
    n_planes = N * C
    P, vmem_limit = _plane_batch_and_vmem(n_planes, H, W, x.dtype.itemsize)
    # Static choice (no runtime try/except retrace): XLU rolls only when the
    # lane axis is 128-aligned and the sublane axis is 8-aligned.
    use_roll = (W % 128 == 0) and (H % 8 == 0)

    xf = x.reshape(n_planes, H, W)
    yf = y.reshape(n_planes, H, W)

    out = pl.pallas_call(
        _make_ssim_kernel(use_roll),
        out_shape=jax.ShapeDtypeStruct((n_planes, H, W), x.dtype),
        grid=(pl.cdiv(n_planes, P),),
        in_specs=[
            pl.BlockSpec((P, H, W), lambda i: (i, 0, 0)),
            pl.BlockSpec((P, H, W), lambda i: (i, 0, 0)),
        ],
        out_specs=pl.BlockSpec((P, H, W), lambda i: (i, 0, 0)),
        compiler_params=pltpu.CompilerParams(
            dimension_semantics=("parallel",),
            vmem_limit_bytes=vmem_limit,
        ),
    )(xf, yf)
    return out.reshape(N, C, H, W)


@jax.jit
def ssim_pallas(x, y):
    """x, y: (N, C, H, W). Returns per-pixel SSIM loss, shape (N, C, H, W)."""
    return _ssim_pallas_impl(x, y)


def _ssim_reference(x, y):
    # Pure-JAX reference mirroring the PyTorch module, for validation.
    def pad(a):
        return jnp.pad(a, ((0, 0), (0, 0), (1, 1), (1, 1)), mode="reflect")

    def pool3(a):  # 3x3 stride-1 avg pool on padded NCHW
        H = a.shape[2] - 2
        W = a.shape[3] - 2
        acc = jnp.zeros(a.shape[:2] + (H, W), a.dtype)
        for di in range(3):
            for dj in range(3):
                acc = acc + a[:, :, di:di + H, dj:dj + W]
        return acc / 9.0

    xp, yp = pad(x), pad(y)
    mu_x, mu_y = pool3(xp), pool3(yp)
    sigma_x = pool3(xp ** 2) - mu_x ** 2
    sigma_y = pool3(yp ** 2) - mu_y ** 2
    sigma_xy = pool3(xp * yp) - mu_x * mu_y
    n = (2 * mu_x * mu_y + C1) * (2 * sigma_xy + C2)
    d = (mu_x ** 2 + mu_y ** 2 + C1) * (sigma_x + sigma_y + C2)
    return jnp.clip((1 - n / d) / 2, 0.0, 1.0)


if __name__ == "__main__":
    key = jax.random.PRNGKey(0)
    kx, ky = jax.random.split(key)
    N, C, H, W = 2, 4, 16, 16
    x = jax.random.uniform(kx, (N, C, H, W), dtype=jnp.float32)
    y = jax.random.uniform(ky, (N, C, H, W), dtype=jnp.float32)

    out = jax.block_until_ready(ssim_pallas(x, y))

    ref = _ssim_reference(x, y)
    assert out.shape == (N, C, H, W)
    assert jnp.allclose(out, ref, atol=1e-5, rtol=1e-5), "mismatch vs reference"
    print("KERNEL_OK")
</pallas_src>

<mosaic_0001>
module attributes {stable_mosaic.version = 11 : i64} {
  func.func @kernel(%arg0: i32, %arg1: memref<4x16x16xf32, #tpu.memory_space<vmem>>, %arg2: memref<4x16x16xf32, #tpu.memory_space<vmem>>, %arg3: memref<4x16x16xf32, #tpu.memory_space<vmem>>) attributes {dimension_semantics = [#tpu.dimension_semantics<parallel>], iteration_bounds = array<i64: 2>, scalar_prefetch = 0 : i64, scratch_operands = 0 : i64, tpu.core_type = #tpu.core_type<tc>, window_params = [{transform_indices = @transform_0, window_bounds = array<i64: 4, 16, 16>}, {transform_indices = @transform_1, window_bounds = array<i64: 4, 16, 16>}, {transform_indices = @transform_2, window_bounds = array<i64: 4, 16, 16>}]} {
    %c0 = arith.constant 0 : index
    %c0_0 = arith.constant 0 : index
    %c0_1 = arith.constant 0 : index
    %0 = vector.load %arg1[%c0, %c0_0, %c0_1] : memref<4x16x16xf32, #tpu.memory_space<vmem>>, vector<4x16x16xf32>
    %c0_2 = arith.constant 0 : index
    %c0_3 = arith.constant 0 : index
    %c0_4 = arith.constant 0 : index
    %1 = vector.load %arg2[%c0_2, %c0_3, %c0_4] : memref<4x16x16xf32, #tpu.memory_space<vmem>>, vector<4x16x16xf32>
    %2 = vector.extract_strided_slice %0 {offsets = [0, 1, 0], sizes = [4, 1, 16], strides = [1, 1, 1]} : vector<4x16x16xf32> to vector<4x1x16xf32>
    %3 = vector.extract_strided_slice %0 {offsets = [0, 0, 0], sizes = [4, 15, 16], strides = [1, 1, 1]} : vector<4x16x16xf32> to vector<4x15x16xf32>
    %4 = tpu.concatenate %2, %3 in 1 : vector<4x1x16xf32>, vector<4x15x16xf32> -> vector<4x16x16xf32>
    %5 = vector.extract_strided_slice %0 {offsets = [0, 1, 0], sizes = [4, 15, 16], strides = [1, 1, 1]} : vector<4x16x16xf32> to vector<4x15x16xf32>
    %6 = vector.extract_strided_slice %0 {offsets = [0, 14, 0], sizes = [4, 1, 16], strides = [1, 1, 1]} : vector<4x16x16xf32> to vector<4x1x16xf32>
    %7 = tpu.concatenate %5, %6 in 1 : vector<4x15x16xf32>, vector<4x1x16xf32> -> vector<4x16x16xf32>
    %8 = arith.addf %4, %0 : vector<4x16x16xf32>
    %9 = arith.addf %8, %7 : vector<4x16x16xf32>
    %10 = vector.extract_strided_slice %9 {offsets = [0, 0, 1], sizes = [4, 16, 1], strides = [1, 1, 1]} : vector<4x16x16xf32> to vector<4x16x1xf32>
    %11 = vector.extract_strided_slice %9 {offsets = [0, 0, 0], sizes = [4, 16, 15], strides = [1, 1, 1]} : vector<4x16x16xf32> to vector<4x16x15xf32>
    %12 = tpu.concatenate %10, %11 in 2 : vector<4x16x1xf32>, vector<4x16x15xf32> -> vector<4x16x16xf32>
    %13 = vector.extract_strided_slice %9 {offsets = [0, 0, 1], sizes = [4, 16, 15], strides = [1, 1, 1]} : vector<4x16x16xf32> to vector<4x16x15xf32>
    %14 = vector.extract_strided_slice %9 {offsets = [0, 0, 14], sizes = [4, 16, 1], strides = [1, 1, 1]} : vector<4x16x16xf32> to vector<4x16x1xf32>
    %15 = tpu.concatenate %13, %14 in 2 : vector<4x16x15xf32>, vector<4x16x1xf32> -> vector<4x16x16xf32>
    %16 = arith.addf %12, %9 : vector<4x16x16xf32>
    %17 = arith.addf %16, %15 : vector<4x16x16xf32>
    %cst = arith.constant 0.111111112 : f32
    %18 = vector.broadcast %cst : f32 to vector<4x16x16xf32>
    %19 = arith.mulf %17, %18 : vector<4x16x16xf32>
    %20 = vector.extract_strided_slice %1 {offsets = [0, 1, 0], sizes = [4, 1, 16], strides = [1, 1, 1]} : vector<4x16x16xf32> to vector<4x1x16xf32>
    %21 = vector.extract_strided_slice %1 {offsets = [0, 0, 0], sizes = [4, 15, 16], strides = [1, 1, 1]} : vector<4x16x16xf32> to vector<4x15x16xf32>
    %22 = tpu.concatenate %20, %21 in 1 : vector<4x1x16xf32>, vector<4x15x16xf32> -> vector<4x16x16xf32>
    %23 = vector.extract_strided_slice %1 {offsets = [0, 1, 0], sizes = [4, 15, 16], strides = [1, 1, 1]} : vector<4x16x16xf32> to vector<4x15x16xf32>
    %24 = vector.extract_strided_slice %1 {offsets = [0, 14, 0], sizes = [4, 1, 16], strides = [1, 1, 1]} : vector<4x16x16xf32> to vector<4x1x16xf32>
    %25 = tpu.concatenate %23, %24 in 1 : vector<4x15x16xf32>, vector<4x1x16xf32> -> vector<4x16x16xf32>
    %26 = arith.addf %22, %1 : vector<4x16x16xf32>
    %27 = arith.addf %26, %25 : vector<4x16x16xf32>
    %28 = vector.extract_strided_slice %27 {offsets = [0, 0, 1], sizes = [4, 16, 1], strides = [1, 1, 1]} : vector<4x16x16xf32> to vector<4x16x1xf32>
    %29 = vector.extract_strided_slice %27 {offsets = [0, 0, 0], sizes = [4, 16, 15], strides = [1, 1, 1]} : vector<4x16x16xf32> to vector<4x16x15xf32>
    %30 = tpu.concatenate %28, %29 in 2 : vector<4x16x1xf32>, vector<4x16x15xf32> -> vector<4x16x16xf32>
    %31 = vector.extract_strided_slice %27 {offsets = [0, 0, 1], sizes = [4, 16, 15], strides = [1, 1, 1]} : vector<4x16x16xf32> to vector<4x16x15xf32>
    %32 = vector.extract_strided_slice %27 {offsets = [0, 0, 14], sizes = [4, 16, 1], strides = [1, 1, 1]} : vector<4x16x16xf32> to vector<4x16x1xf32>
    %33 = tpu.concatenate %31, %32 in 2 : vector<4x16x15xf32>, vector<4x16x1xf32> -> vector<4x16x16xf32>
    %34 = arith.addf %30, %27 : vector<4x16x16xf32>
    %35 = arith.addf %34, %33 : vector<4x16x16xf32>
    %cst_5 = arith.constant 0.111111112 : f32
    %36 = vector.broadcast %cst_5 : f32 to vector<4x16x16xf32>
    %37 = arith.mulf %35, %36 : vector<4x16x16xf32>
    %38 = arith.mulf %19, %19 : vector<4x16x16xf32>
    %39 = arith.mulf %37, %37 : vector<4x16x16xf32>
    %40 = arith.mulf %19, %37 : vector<4x16x16xf32>
    %41 = arith.mulf %0, %0 : vector<4x16x16xf32>
    %42 = vector.extract_strided_slice %41 {offsets = [0, 1, 0], sizes = [4, 1, 16], strides = [1, 1, 1]} : vector<4x16x16xf32> to vector<4x1x16xf32>
    %43 = vector.extract_strided_slice %41 {offsets = [0, 0, 0], sizes = [4, 15, 16], strides = [1, 1, 1]} : vector<4x16x16xf32> to vector<4x15x16xf32>
    %44 = tpu.concatenate %42, %43 in 1 : vector<4x1x16xf32>, vector<4x15x16xf32> -> vector<4x16x16xf32>
    %45 = vector.extract_strided_slice %41 {offsets = [0, 1, 0], sizes = [4, 15, 16], strides = [1, 1, 1]} : vector<4x16x16xf32> to vector<4x15x16xf32>
    %46 = vector.extract_strided_slice %41 {offsets = [0, 14, 0], sizes = [4, 1, 16], strides = [1, 1, 1]} : vector<4x16x16xf32> to vector<4x1x16xf32>
    %47 = tpu.concatenate %45, %46 in 1 : vector<4x15x16xf32>, vector<4x1x16xf32> -> vector<4x16x16xf32>
    %48 = arith.addf %44, %41 : vector<4x16x16xf32>
    %49 = arith.addf %48, %47 : vector<4x16x16xf32>
    %50 = vector.extract_strided_slice %49 {offsets = [0, 0, 1], sizes = [4, 16, 1], strides = [1, 1, 1]} : vector<4x16x16xf32> to vector<4x16x1xf32>
    %51 = vector.extract_strided_slice %49 {offsets = [0, 0, 0], sizes = [4, 16, 15], strides = [1, 1, 1]} : vector<4x16x16xf32> to vector<4x16x15xf32>
    %52 = tpu.concatenate %50, %51 in 2 : vector<4x16x1xf32>, vector<4x16x15xf32> -> vector<4x16x16xf32>
    %53 = vector.extract_strided_slice %49 {offsets = [0, 0, 1], sizes = [4, 16, 15], strides = [1, 1, 1]} : vector<4x16x16xf32> to vector<4x16x15xf32>
    %54 = vector.extract_strided_slice %49 {offsets = [0, 0, 14], sizes = [4, 16, 1], strides = [1, 1, 1]} : vector<4x16x16xf32> to vector<4x16x1xf32>
    %55 = tpu.concatenate %53, %54 in 2 : vector<4x16x15xf32>, vector<4x16x1xf32> -> vector<4x16x16xf32>
    %56 = arith.addf %52, %49 : vector<4x16x16xf32>
    %57 = arith.addf %56, %55 : vector<4x16x16xf32>
    %cst_6 = arith.constant 0.111111112 : f32
    %58 = vector.broadcast %cst_6 : f32 to vector<4x16x16xf32>
    %59 = arith.mulf %57, %58 : vector<4x16x16xf32>
    %60 = arith.subf %59, %38 : vector<4x16x16xf32>
    %61 = arith.mulf %1, %1 : vector<4x16x16xf32>
    %62 = vector.extract_strided_slice %61 {offsets = [0, 1, 0], sizes = [4, 1, 16], strides = [1, 1, 1]} : vector<4x16x16xf32> to vector<4x1x16xf32>
    %63 = vector.extract_strided_slice %61 {offsets = [0, 0, 0], sizes = [4, 15, 16], strides = [1, 1, 1]} : vector<4x16x16xf32> to vector<4x15x16xf32>
    %64 = tpu.concatenate %62, %63 in 1 : vector<4x1x16xf32>, vector<4x15x16xf32> -> vector<4x16x16xf32>
    %65 = vector.extract_strided_slice %61 {offsets = [0, 1, 0], sizes = [4, 15, 16], strides = [1, 1, 1]} : vector<4x16x16xf32> to vector<4x15x16xf32>
    %66 = vector.extract_strided_slice %61 {offsets = [0, 14, 0], sizes = [4, 1, 16], strides = [1, 1, 1]} : vector<4x16x16xf32> to vector<4x1x16xf32>
    %67 = tpu.concatenate %65, %66 in 1 : vector<4x15x16xf32>, vector<4x1x16xf32> -> vector<4x16x16xf32>
    %68 = arith.addf %64, %61 : vector<4x16x16xf32>
    %69 = arith.addf %68, %67 : vector<4x16x16xf32>
    %70 = vector.extract_strided_slice %69 {offsets = [0, 0, 1], sizes = [4, 16, 1], strides = [1, 1, 1]} : vector<4x16x16xf32> to vector<4x16x1xf32>
    %71 = vector.extract_strided_slice %69 {offsets = [0, 0, 0], sizes = [4, 16, 15], strides = [1, 1, 1]} : vector<4x16x16xf32> to vector<4x16x15xf32>
    %72 = tpu.concatenate %70, %71 in 2 : vector<4x16x1xf32>, vector<4x16x15xf32> -> vector<4x16x16xf32>
    %73 = vector.extract_strided_slice %69 {offsets = [0, 0, 1], sizes = [4, 16, 15], strides = [1, 1, 1]} : vector<4x16x16xf32> to vector<4x16x15xf32>
    %74 = vector.extract_strided_slice %69 {offsets = [0, 0, 14], sizes = [4, 16, 1], strides = [1, 1, 1]} : vector<4x16x16xf32> to vector<4x16x1xf32>
    %75 = tpu.concatenate %73, %74 in 2 : vector<4x16x15xf32>, vector<4x16x1xf32> -> vector<4x16x16xf32>
    %76 = arith.addf %72, %69 : vector<4x16x16xf32>
    %77 = arith.addf %76, %75 : vector<4x16x16xf32>
    %cst_7 = arith.constant 0.111111112 : f32
    %78 = vector.broadcast %cst_7 : f32 to vector<4x16x16xf32>
    %79 = arith.mulf %77, %78 : vector<4x16x16xf32>
    %80 = arith.subf %79, %39 : vector<4x16x16xf32>
    %81 = arith.mulf %0, %1 : vector<4x16x16xf32>
    %82 = vector.extract_strided_slice %81 {offsets = [0, 1, 0], sizes = [4, 1, 16], strides = [1, 1, 1]} : vector<4x16x16xf32> to vector<4x1x16xf32>
    %83 = vector.extract_strided_slice %81 {offsets = [0, 0, 0], sizes = [4, 15, 16], strides = [1, 1, 1]} : vector<4x16x16xf32> to vector<4x15x16xf32>
    %84 = tpu.concatenate %82, %83 in 1 : vector<4x1x16xf32>, vector<4x15x16xf32> -> vector<4x16x16xf32>
    %85 = vector.extract_strided_slice %81 {offsets = [0, 1, 0], sizes = [4, 15, 16], strides = [1, 1, 1]} : vector<4x16x16xf32> to vector<4x15x16xf32>
    %86 = vector.extract_strided_slice %81 {offsets = [0, 14, 0], sizes = [4, 1, 16], strides = [1, 1, 1]} : vector<4x16x16xf32> to vector<4x1x16xf32>
    %87 = tpu.concatenate %85, %86 in 1 : vector<4x15x16xf32>, vector<4x1x16xf32> -> vector<4x16x16xf32>
    %88 = arith.addf %84, %81 : vector<4x16x16xf32>
    %89 = arith.addf %88, %87 : vector<4x16x16xf32>
    %90 = vector.extract_strided_slice %89 {offsets = [0, 0, 1], sizes = [4, 16, 1], strides = [1, 1, 1]} : vector<4x16x16xf32> to vector<4x16x1xf32>
    %91 = vector.extract_strided_slice %89 {offsets = [0, 0, 0], sizes = [4, 16, 15], strides = [1, 1, 1]} : vector<4x16x16xf32> to vector<4x16x15xf32>
    %92 = tpu.concatenate %90, %91 in 2 : vector<4x16x1xf32>, vector<4x16x15xf32> -> vector<4x16x16xf32>
    %93 = vector.extract_strided_slice %89 {offsets = [0, 0, 1], sizes = [4, 16, 15], strides = [1, 1, 1]} : vector<4x16x16xf32> to vector<4x16x15xf32>
    %94 = vector.extract_strided_slice %89 {offsets = [0, 0, 14], sizes = [4, 16, 1], strides = [1, 1, 1]} : vector<4x16x16xf32> to vector<4x16x1xf32>
    %95 = tpu.concatenate %93, %94 in 2 : vector<4x16x15xf32>, vector<4x16x1xf32> -> vector<4x16x16xf32>
    %96 = arith.addf %92, %89 : vector<4x16x16xf32>
    %97 = arith.addf %96, %95 : vector<4x16x16xf32>
    %cst_8 = arith.constant 0.111111112 : f32
    %98 = vector.broadcast %cst_8 : f32 to vector<4x16x16xf32>
    %99 = arith.mulf %97, %98 : vector<4x16x16xf32>
    %100 = arith.subf %99, %40 : vector<4x16x16xf32>
    %cst_9 = arith.constant 2.000000e+00 : f32
    %101 = vector.broadcast %cst_9 : f32 to vector<4x16x16xf32>
    %102 = arith.mulf %101, %40 : vector<4x16x16xf32>
    %cst_10 = arith.constant 9.99999974E-5 : f32
    %103 = vector.broadcast %cst_10 : f32 to vector<4x16x16xf32>
    %104 = arith.addf %102, %103 : vector<4x16x16xf32>
    %cst_11 = arith.constant 2.000000e+00 : f32
    %105 = vector.broadcast %cst_11 : f32 to vector<4x16x16xf32>
    %106 = arith.mulf %105, %100 : vector<4x16x16xf32>
    %cst_12 = arith.constant 8.99999984E-4 : f32
    %107 = vector.broadcast %cst_12 : f32 to vector<4x16x16xf32>
    %108 = arith.addf %106, %107 : vector<4x16x16xf32>
    %109 = arith.mulf %104, %108 : vector<4x16x16xf32>
    %110 = arith.addf %38, %39 : vector<4x16x16xf32>
    %cst_13 = arith.constant 9.99999974E-5 : f32
    %111 = vector.broadcast %cst_13 : f32 to vector<4x16x16xf32>
    %112 = arith.addf %110, %111 : vector<4x16x16xf32>
    %113 = arith.addf %60, %80 : vector<4x16x16xf32>
    %cst_14 = arith.constant 8.99999984E-4 : f32
    %114 = vector.broadcast %cst_14 : f32 to vector<4x16x16xf32>
    %115 = arith.addf %113, %114 : vector<4x16x16xf32>
    %116 = arith.mulf %112, %115 : vector<4x16x16xf32>
    %117 = tpu.reciprocal %116 {approx = true} : vector<4x16x16xf32> -> vector<4x16x16xf32>
    %118 = arith.mulf %116, %117 : vector<4x16x16xf32>
    %cst_15 = arith.constant 2.000000e+00 : f32
    %119 = vector.broadcast %cst_15 : f32 to vector<4x16x16xf32>
    %120 = arith.subf %119, %118 : vector<4x16x16xf32>
    %121 = arith.mulf %117, %120 : vector<4x16x16xf32>
    %122 = arith.mulf %109, %121 : vector<4x16x16xf32>
    %cst_16 = arith.constant 1.000000e+00 : f32
    %123 = vector.broadcast %cst_16 : f32 to vector<4x16x16xf32>
    %124 = arith.subf %123, %122 : vector<4x16x16xf32>
    %cst_17 = arith.constant 5.000000e-01 : f32
    %125 = vector.broadcast %cst_17 : f32 to vector<4x16x16xf32>
    %126 = arith.mulf %124, %125 : vector<4x16x16xf32>
    %cst_18 = arith.constant 0.000000e+00 : f32
    %cst_19 = arith.constant 1.000000e+00 : f32
    %127 = vector.broadcast %cst_18 : f32 to vector<4x16x16xf32>
    %128 = arith.maximumf %127, %126 : vector<4x16x16xf32>
    %129 = vector.broadcast %cst_19 : f32 to vector<4x16x16xf32>
    %130 = arith.minimumf %129, %128 : vector<4x16x16xf32>
    %c0_20 = arith.constant 0 : index
    %c0_21 = arith.constant 0 : index
    %c0_22 = arith.constant 0 : index
    %131 = vector.load %arg3[%c0_20, %c0_21, %c0_22] : memref<4x16x16xf32, #tpu.memory_space<vmem>>, vector<4x16x16xf32>
    tpu.vector_store %arg3[%c0_20, %c0_21, %c0_22], %130 {strides = array<i32>} : memref<4x16x16xf32, #tpu.memory_space<vmem>>, vector<4x16x16xf32>,
    return
  }
  func.func @transform_0(%arg0: i32) -> (i32, i32, i32) {
    %c0_i32 = arith.constant 0 : i32
    %c0_i32_0 = arith.constant 0 : i32
    %c0_i32_1 = arith.constant 0 : i32
    return %arg0, %c0_i32, %c0_i32_0 : i32, i32, i32
  }
  func.func @transform_1(%arg0: i32) -> (i32, i32, i32) {
    %c0_i32 = arith.constant 0 : i32
    %c0_i32_0 = arith.constant 0 : i32
    %c0_i32_1 = arith.constant 0 : i32
    return %arg0, %c0_i32, %c0_i32_0 : i32, i32, i32
  }
  func.func @transform_2(%arg0: i32) -> (i32, i32, i32) {
    %c0_i32 = arith.constant 0 : i32
    %c0_i32_0 = arith.constant 0 : i32
    %c0_i32_1 = arith.constant 0 : i32
    return %arg0, %c0_i32, %c0_i32_0 : i32, i32, i32
  }
}

</mosaic_0001>

<llo_original>
// kernel: ssim_pallas.1
$region0: #{ssim_pallas.1}
  #allocation0 [shape = 'u32[]', space=smem, size = 0x4, offset = 0x4, fixed_abs, tag = 'smem constant byte address 0x4 - core index']
  #allocation1 [shape = 'u32[144,128]{1,0:T(1,128)}', space=vmem, size = 0x12000, scoped, tag = 'internal scratch']
  %s0 = inlined_call_operand.hbm [shape: f32[8,16,16], index: 0, kind: input, shape index: {}]
  %s1 = inlined_call_operand.hbm [shape: f32[8,16,16], index: 1, kind: input, shape index: {}]
  %s2 = inlined_call_operand.hbm [shape: f32[8,16,16], index: 2, kind: output, shape index: {}]
  %s3 = sld [smem:[#allocation0]]
  $region49: #{ssim_pallas.1} parent=0
    _
  %s5 = ssub.s32 1, %s3
  %s6 = scalar_select 0, %s5, %s3
  $region1: #{ssim_pallas.1} parent=0
    #allocation2 [shape = 'u8[65536]{0}', space=vmem, size = 0x10000, scoped, tag = 'input window, operand 0']
    #allocation3 [shape = 's32[2]{0}', space=sflag, size = 0x8, scoped, tag = 'scoped memory for ssim_pallas.1']
    #allocation4 [shape = 's32[2]{0}', space=sflag, size = 0x8, scoped, tag = 'scoped memory for ssim_pallas.1']
    #allocation5 [shape = 'u8[65536]{0}', space=vmem, size = 0x10000, scoped, tag = 'input window, operand 1']
    #allocation6 [shape = 's32[2]{0}', space=sflag, size = 0x8, scoped, tag = 'scoped memory for ssim_pallas.1']
    #allocation7 [shape = 'u8[65536]{0}', space=vmem, size = 0x10000, scoped, tag = 'output window, operand 0']
    %7 = vsyncpa [#allocation3], 0
    %s8 = scalar_lea.sflag [#allocation3], 1
    %9 = vsyncpa %s8, 0
    %10 = vsyncpa [#allocation6], 0
    %s11 = scalar_lea.sflag [#allocation6], 1
    %12 = vsyncpa %s11, 0
    %13 = vsyncpa [#allocation4], 0
    %s14 = scalar_lea.sflag [#allocation4], 1
    %15 = vsyncpa %s14, 0
    loop: start=0, step=1, limit=4
    $region2: #{ssim_pallas.1} parent=1 // loop_pre_header
      _
    $region3: #{ssim_pallas.1} parent=1 // loop_header
      %s17 = sphi 0, %s21
      %p18 = scmp.ge.s32.totalorder %s17, 4
      %s27 = sphi 0, %s29
      %s30 = sphi 0, %s27
      %s31 = sphi 0, %s30
      %s47 = sphi 0, %s31
      %s53 = sphi 0, %s55
      %s56 = sphi 0, %s53
      %s57 = sphi 0, %s56
      %s73 = sphi 0, %s57
      %s79 = sphi 0, %s81
      %s82 = sphi 0, %s79
      %s83 = sphi 0, %s82
      %s99 = sphi 0, %s83
    $region4: #{ssim_pallas.1} parent=1 // loop_header_branch
      %20 = sbr.rel (%p18) target = $region8
    $region5: #{ssim_pallas.1} parent=1 // loop_body
      %s22 = ssub.s32 %s17, 1
      %s23 = ssub.s32 %s17, 2
      %s24 = sadd.s32 %s17, 1
      %s25 = ssub.s32 %s17, %s24
      %p26 = scmp.eq.s32.totalorder %s25, 0
      %s28 = sadd.s32 %s27, 1
      %s29 = scalar_select %p26, %s27, %s28
      %p32 = pneg %p26
      %p33 = scmp.eq.s32.totalorder %s17, 1
      %p34 = por %p32, %p33
      %p35 = scmp.ne.s32.totalorder %s27, %s30
      %p36 = scmp.eq.s32.totalorder %s17, 0
      %p37 = por %p35, %p36
      %p38 = scmp.ne.s32.totalorder %s27, %s30
      %p39 = scmp.eq.s32.totalorder %s22, 1
      %p40 = por %p38, %p39
      %p41 = scmp.ne.s32.totalorder %s30, %s31
      %p42 = scmp.eq.s32.totalorder %s22, 0
      %p43 = por %p41, %p42
      %p44 = scmp.ne.s32.totalorder %s30, %s31
      %p45 = scmp.eq.s32.totalorder %s23, 1
      %p46 = por %p44, %p45
      %p48 = scmp.ne.s32.totalorder %s31, %s47
      %p49 = scmp.eq.s32.totalorder %s23, 0
      %p50 = por %p48, %p49
      %s51 = ssub.s32 %s17, %s24
      %p52 = scmp.eq.s32.totalorder %s51, 0
      %s54 = sadd.s32 %s53, 1
      %s55 = scalar_select %p52, %s53, %s54
      %p58 = pneg %p52
      %p59 = scmp.eq.s32.totalorder %s17, 1
      %p60 = por %p58, %p59
      %p61 = scmp.ne.s32.totalorder %s53, %s56
      %p62 = scmp.eq.s32.totalorder %s17, 0
      %p63 = por %p61, %p62
      %p64 = scmp.ne.s32.totalorder %s53, %s56
      %p65 = scmp.eq.s32.totalorder %s22, 1
      %p66 = por %p64, %p65
      %p67 = scmp.ne.s32.totalorder %s56, %s57
      %p68 = scmp.eq.s32.totalorder %s22, 0
      %p69 = por %p67, %p68
      %p70 = scmp.ne.s32.totalorder %s56, %s57
      %p71 = scmp.eq.s32.totalorder %s23, 1
      %p72 = por %p70, %p71
      %p74 = scmp.ne.s32.totalorder %s57, %s73
      %p75 = scmp.eq.s32.totalorder %s23, 0
      %p76 = por %p74, %p75
      %s77 = ssub.s32 %s17, %s24
      %p78 = scmp.eq.s32.totalorder %s77, 0
      %s80 = sadd.s32 %s79, 1
      %s81 = scalar_select %p78, %s79, %s80
      %p84 = pneg %p78
      %p85 = scmp.eq.s32.totalorder %s17, 1
      %p86 = por %p84, %p85
      %p87 = scmp.ne.s32.totalorder %s79, %s82
      %p88 = scmp.eq.s32.totalorder %s17, 0
      %p89 = por %p87, %p88
      %p90 = scmp.ne.s32.totalorder %s79, %s82
      %p91 = scmp.eq.s32.totalorder %s22, 1
      %p92 = por %p90, %p91
      %p93 = scmp.ne.s32.totalorder %s82, %s83
      %p94 = scmp.eq.s32.totalorder %s22, 0
      %p95 = por %p93, %p94
      %p96 = scmp.ne.s32.totalorder %s82, %s83
      %p97 = scmp.eq.s32.totalorder %s23, 1
      %p98 = por %p96, %p97
      %p100 = scmp.ne.s32.totalorder %s83, %s99
      %p101 = scmp.eq.s32.totalorder %s23, 0
      %p102 = por %p100, %p101
      %p103 = scmp.le.s32.totalorder 1, %s17
      %p104 = scmp.lt.s32.totalorder %s17, 3
      %p105 = pnand %p103, %p104
      %p106 = pneg %p105
      // Predicated region
      $region9: #{ssim_pallas.1} parent=5 // pred_check
        _
      $region10: #{ssim_pallas.1} parent=5 // pred_check_branch
        %108 = sbr.rel (%p105) target = $region12
      $region11: #{ssim_pallas.1} parent=5 // pred_region
        %s109 = ssub.s32 %s17, 1
      $region12: #{ssim_pallas.1} parent=5 // pred_fallthru
        _
      %p110 = scmp.lt.s32.totalorder %s17, 2
      // Predicated region
      $region13: #{ssim_pallas.1} parent=5 // pred_check
        %p111 = pneg %p110
      $region14: #{ssim_pallas.1} parent=5 // pred_check_branch
        %113 = sbr.rel (%p111) target = $region16
      $region15: #{ssim_pallas.1} parent=5 // pred_region
        // Predicated region
        $region17: #{ssim_pallas.1} parent=15 // pred_check
          %p114 = pneg %p37
        $region18: #{ssim_pallas.1} parent=15 // pred_check_branch
          %116 = sbr.rel (%p114) target = $region20
        $region19: #{ssim_pallas.1} parent=15 // pred_region
          %s117 = sand.u32 %s27, 1
          %s118 = scalar_lea.sflag [#allocation3], %s117
          %s119 = sand.u32 %s27, 1
          %s120 = smul.addr %s119, 64
          %s121 = scalar_lea.vmem [#allocation2], %s120
          %s122 = smul.u32 4, %s17
          %s124 = ssub.s32 1024, 1024
          %125 = vsyncadd %s118, %s124
          %s126 = smul.addr %s122, 2
          %s127 = smul.addr %s126, 128
          %s128 = scalar_lea.hbm %s0, %s127
          %s129 = sshll.u32 %s121, 4
          %s130 = int_to_ptr.vmem [resolvable:$true] %s129
          %135 = dma.hbm_to_vmem [thread:$0]  %s128, 1024, %s130, %s118, 128, 128, 8
        $region20: #{ssim_pallas.1} parent=15 // pred_fallthru
          _
        // Predicated region
        $region21: #{ssim_pallas.1} parent=15 // pred_check
          %p136 = pneg %p63
        $region22: #{ssim_pallas.1} parent=15 // pred_check_branch
          %138 = sbr.rel (%p136) target = $region24
        $region23: #{ssim_pallas.1} parent=15 // pred_region
          %s139 = sand.u32 %s53, 1
          %s140 = scalar_lea.sflag [#allocation6], %s139
          %s141 = sand.u32 %s53, 1
          %s142 = smul.addr %s141, 64
          %s143 = scalar_lea.vmem [#allocation5], %s142
          %s144 = smul.u32 4, %s17
          %s146 = ssub.s32 1024, 1024
          %147 = vsyncadd %s140, %s146
          %s148 = smul.addr %s144, 2
          %s149 = smul.addr %s148, 128
          %s150 = scalar_lea.hbm %s1, %s149
          %s151 = sshll.u32 %s143, 4
          %s152 = int_to_ptr.vmem [resolvable:$true] %s151
          %157 = dma.hbm_to_vmem [thread:$0]  %s150, 1024, %s152, %s140, 128, 128, 8
        $region24: #{ssim_pallas.1} parent=15 // pred_fallthru
          _
      $region16: #{ssim_pallas.1} parent=5 // pred_fallthru
        _
      %p158 = scmp.le.s32.totalorder 1, %s17
      %p159 = scmp.lt.s32.totalorder %s17, 3
      %p160 = pnand %p158, %p159
      %p161 = pneg %p160
      // Predicated region
      $region25: #{ssim_pallas.1} parent=5 // pred_check
        _
      $region26: #{ssim_pallas.1} parent=5 // pred_check_branch
        %163 = sbr.rel (%p160) target = $region28
      $region27: #{ssim_pallas.1} parent=5 // pred_region
        %s164 = ssub.s32 %s17, 1
        %s165 = sand.u32 %s30, 1
        %s166 = scalar_lea.sflag [#allocation3], %s165
        %s167 = sand.u32 %s30, 1
        %s168 = smul.addr %s167, 64
        %s169 = scalar_lea.vmem [#allocation2], %s168
        // Predicated region
        $region29: #{ssim_pallas.1} parent=27 // pred_check
          %p170 = pneg %p43
        $region30: #{ssim_pallas.1} parent=27 // pred_check_branch
          %172 = sbr.rel (%p170) target = $region32
        $region31: #{ssim_pallas.1} parent=27 // pred_region
          %173 = dma.done %s166, 1024
        $region32: #{ssim_pallas.1} parent=27 // pred_fallthru
          _
        %s174 = sand.u32 %s56, 1
        %s175 = scalar_lea.sflag [#allocation6], %s174
        %s176 = sand.u32 %s56, 1
        %s177 = smul.addr %s176, 64
        %s178 = scalar_lea.vmem [#allocation5], %s177
        // Predicated region
        $region33: #{ssim_pallas.1} parent=27 // pred_check
          %p179 = pneg %p69
        $region34: #{ssim_pallas.1} parent=27 // pred_check_branch
          %181 = sbr.rel (%p179) target = $region36
        $region35: #{ssim_pallas.1} parent=27 // pred_region
          %182 = dma.done %s175, 1024
        $region36: #{ssim_pallas.1} parent=27 // pred_fallthru
          _
        %s183 = sand.u32 %s30, 1
        %s184 = scalar_lea.sflag [#allocation3], %s183
        %s185 = sand.u32 %s30, 1
        %s186 = smul.addr %s185, 64
        %s187 = scalar_lea.vmem [#allocation2], %s186
        %p188 = pneg %p43
        %p189 = pneg %p40
        %s190 = sand.u32 %s56, 1
        %s191 = scalar_lea.sflag [#allocation6], %s190
        %s192 = sand.u32 %s56, 1
        %s193 = smul.addr %s192, 64
        %s194 = scalar_lea.vmem [#allocation5], %s193
        %p195 = pneg %p69
        %p196 = pneg %p66
        %p197 = pneg %p95
        %p198 = pneg %p92
        %s199 = sand.u32 %s82, 1
        %s200 = scalar_lea.sflag [#allocation4], %s199
        %s201 = sand.u32 %s82, 1
        %s202 = smul.addr %s201, 64
        %s203 = scalar_lea.vmem [#allocation7], %s202
        %s204 = smul.u32 4, %s22
        %s205 = smul.u32 4, %s22
        %s206 = smul.u32 4, %s22
        %v207 = vld [vmem:[%s169] sm:$0xff]
        %v208 = vld [vmem:[%s169 + $0x8] sm:$0xff]
        %v209 = vld [vmem:[%s169 + $0x10] sm:$0xff]
        %v210 = vld [vmem:[%s169 + $0x18] sm:$0xff]
        %v211 = vld [vmem:[%s169 + $0x20] sm:$0xff]
        %v212 = vld [vmem:[%s169 + $0x28] sm:$0xff]
        %v213 = vld [vmem:[%s169 + $0x30] sm:$0xff]
        %v214 = vld [vmem:[%s169 + $0x38] sm:$0xff]
        %v215 = vld [vmem:[%s178] sm:$0xff]
        %v216 = vld [vmem:[%s178 + $0x8] sm:$0xff]
        %v217 = vld [vmem:[%s178 + $0x10] sm:$0xff]
        %v218 = vld [vmem:[%s178 + $0x18] sm:$0xff]
        %v219 = vld [vmem:[%s178 + $0x20] sm:$0xff]
        %v220 = vld [vmem:[%s178 + $0x28] sm:$0xff]
        %v221 = vld [vmem:[%s178 + $0x30] sm:$0xff]
        %v222 = vld [vmem:[%s178 + $0x38] sm:$0xff]
        %v227 = vrot.slane %v207, 1
        %v228 = vrot.slane %v209, 1
        %v229 = vrot.slane %v211, 1
        %v230 = vrot.slane %v213, 1
        %vm239 = vcmask 1040384
        %v240 = vrot.slane %v207, 7
        %v241 = vrot.slane %v208, 7
        %v242 = vsel %vm239, %v240, %v241
        %v243 = vrot.slane %v209, 7
        %v244 = vrot.slane %v210, 7
        %v245 = vsel %vm239, %v243, %v244
        %v246 = vrot.slane %v211, 7
        %v247 = vrot.slane %v212, 7
        %v248 = vsel %vm239, %v246, %v247
        %v249 = vrot.slane %v213, 7
        %v250 = vrot.slane %v214, 7
        %v251 = vsel %vm239, %v249, %v250
        %v260 = vsel %vm239, %v227, %v240
        %v261 = vsel %vm239, %v228, %v243
        %v262 = vsel %vm239, %v229, %v246
        %v263 = vsel %vm239, %v230, %v249
        %vm264 = vcmask 1046528
        %v265 = vrot.slane %v208, 1
        %v266 = vsel %vm264, %v227, %v265
        %v267 = vrot.slane %v210, 1
        %v268 = vsel %vm264, %v228, %v267
        %v269 = vrot.slane %v212, 1
        %v270 = vsel %vm264, %v229, %v269
        %v271 = vrot.slane %v214, 1
        %v272 = vsel %vm264, %v230, %v271
        %v285 = vsel %vm264, %v265, %v241
        %v286 = vsel %vm264, %v267, %v244
        %v287 = vsel %vm264, %v269, %v247
        %v288 = vsel %vm264, %v271, %v250
        %v289 = vadd.f32 %v260, %v207
        %v290 = vadd.f32 %v242, %v208
        %v291 = vadd.f32 %v261, %v209
        %v292 = vadd.f32 %v245, %v210
        %v293 = vadd.f32 %v262, %v211
        %v294 = vadd.f32 %v248, %v212
        %v295 = vadd.f32 %v263, %v213
        %v296 = vadd.f32 %v251, %v214
        %v297 = vadd.f32 %v289, %v266
        %v298 = vadd.f32 %v290, %v285
        %v299 = vadd.f32 %v291, %v268
        %v300 = vadd.f32 %v292, %v286
        %v301 = vadd.f32 %v293, %v270
        %v302 = vadd.f32 %v294, %v287
        %v303 = vadd.f32 %v295, %v272
        %v304 = vadd.f32 %v296, %v288
        %313 = vrot.lane.b32.xlu0 %v297, 127
        %v314 = vpop.permute.xlu0 %313
        %315 = vrot.lane.b32.xlu0 %v298, 127
        %v316 = vpop.permute.xlu0 %315
        %317 = vrot.lane.b32.xlu0 %v299, 127
        %v318 = vpop.permute.xlu0 %317
        %319 = vrot.lane.b32.xlu0 %v300, 127
        %v320 = vpop.permute.xlu0 %319
        %321 = vrot.lane.b32.xlu0 %v301, 127
        %v322 = vpop.permute.xlu0 %321
        %323 = vrot.lane.b32.xlu0 %v302, 127
        %v324 = vpop.permute.xlu0 %323
        %325 = vrot.lane.b32.xlu0 %v303, 127
        %v326 = vpop.permute.xlu0 %325
        %327 = vrot.lane.b32.xlu0 %v304, 127
        %v328 = vpop.permute.xlu0 %327
        %337 = vrot.lane.b32.xlu0 %v297, 1
        %v338 = vpop.permute.xlu0 %337
        %339 = vrot.lane.b32.xlu0 %v298, 1
        %v340 = vpop.permute.xlu0 %339
        %341 = vrot.lane.b32.xlu0 %v299, 1
        %v342 = vpop.permute.xlu0 %341
        %343 = vrot.lane.b32.xlu0 %v300, 1
        %v344 = vpop.permute.xlu0 %343
        %345 = vrot.lane.b32.xlu0 %v301, 1
        %v346 = vpop.permute.xlu0 %345
        %347 = vrot.lane.b32.xlu0 %v302, 1
        %v348 = vpop.permute.xlu0 %347
        %349 = vrot.lane.b32.xlu0 %v303, 1
        %v350 = vpop.permute.xlu0 %349
        %351 = vrot.lane.b32.xlu0 %v304, 1
        %v352 = vpop.permute.xlu0 %351
        %vm361 = vcmask 7168
        %v362 = vsel %vm361, %v314, %v338
        %v363 = vsel %vm361, %v316, %v340
        %v364 = vsel %vm361, %v318, %v342
        %v365 = vsel %vm361, %v320, %v344
        %v366 = vsel %vm361, %v322, %v346
        %v367 = vsel %vm361, %v324, %v348
        %v368 = vsel %vm361, %v326, %v350
        %v369 = vsel %vm361, %v328, %v352
        %vm370 = vcmask 121856
        %v371 = vsel %vm370, %v314, %v338
        %v372 = vsel %vm370, %v316, %v340
        %v373 = vsel %vm370, %v318, %v342
        %v374 = vsel %vm370, %v320, %v344
        %v375 = vsel %vm370, %v322, %v346
        %v376 = vsel %vm370, %v324, %v348
        %v377 = vsel %vm370, %v326, %v350
        %v378 = vsel %vm370, %v328, %v352
        %v379 = vadd.f32 %v362, %v297
        %v380 = vadd.f32 %v363, %v298
        %v381 = vadd.f32 %v364, %v299
        %v382 = vadd.f32 %v365, %v300
        %v383 = vadd.f32 %v366, %v301
        %v384 = vadd.f32 %v367, %v302
        %v385 = vadd.f32 %v368, %v303
        %v386 = vadd.f32 %v369, %v304
        %v387 = vadd.f32 %v379, %v371
        %v388 = vadd.f32 %v380, %v372
        %v389 = vadd.f32 %v381, %v373
        %v390 = vadd.f32 %v382, %v374
        %v391 = vadd.f32 %v383, %v375
        %v392 = vadd.f32 %v384, %v376
        %v393 = vadd.f32 %v385, %v377
        %v394 = vadd.f32 %v386, %v378
        %v395 = vmul.f32 %v387, 0.11111111
        %v396 = vmul.f32 %v388, 0.11111111
        %v397 = vmul.f32 %v389, 0.11111111
        %v398 = vmul.f32 %v390, 0.11111111
        %v399 = vmul.f32 %v391, 0.11111111
        %v400 = vmul.f32 %v392, 0.11111111
        %v401 = vmul.f32 %v393, 0.11111111
        %v402 = vmul.f32 %v394, 0.11111111
        %v407 = vrot.slane %v215, 1
        %v408 = vrot.slane %v217, 1
        %v409 = vrot.slane %v219, 1
        %v410 = vrot.slane %v221, 1
        %v419 = vrot.slane %v215, 7
        %v420 = vrot.slane %v216, 7
        %v421 = vsel %vm239, %v419, %v420
        %v422 = vrot.slane %v217, 7
        %v423 = vrot.slane %v218, 7
        %v424 = vsel %vm239, %v422, %v423
        %v425 = vrot.slane %v219, 7
        %v426 = vrot.slane %v220, 7
        %v427 = vsel %vm239, %v425, %v426
        %v428 = vrot.slane %v221, 7
        %v429 = vrot.slane %v222, 7
        %v430 = vsel %vm239, %v428, %v429
        %v439 = vsel %vm239, %v407, %v419
        %v440 = vsel %vm239, %v408, %v422
        %v441 = vsel %vm239, %v409, %v425
        %v442 = vsel %vm239, %v410, %v428
        %v443 = vrot.slane %v216, 1
        %v444 = vsel %vm264, %v407, %v443
        %v445 = vrot.slane %v218, 1
        %v446 = vsel %vm264, %v408, %v445
        %v447 = vrot.slane %v220, 1
        %v448 = vsel %vm264, %v409, %v447
        %v449 = vrot.slane %v222, 1
        %v450 = vsel %vm264, %v410, %v449
        %v463 = vsel %vm264, %v443, %v420
        %v464 = vsel %vm264, %v445, %v423
        %v465 = vsel %vm264, %v447, %v426
        %v466 = vsel %vm264, %v449, %v429
        %v467 = vadd.f32 %v439, %v215
        %v468 = vadd.f32 %v421, %v216
        %v469 = vadd.f32 %v440, %v217
        %v470 = vadd.f32 %v424, %v218
        %v471 = vadd.f32 %v441, %v219
        %v472 = vadd.f32 %v427, %v220
        %v473 = vadd.f32 %v442, %v221
        %v474 = vadd.f32 %v430, %v222
        %v475 = vadd.f32 %v467, %v444
        %v476 = vadd.f32 %v468, %v463
        %v477 = vadd.f32 %v469, %v446
        %v478 = vadd.f32 %v470, %v464
        %v479 = vadd.f32 %v471, %v448
        %v480 = vadd.f32 %v472, %v465
        %v481 = vadd.f32 %v473, %v450
        %v482 = vadd.f32 %v474, %v466
        %491 = vrot.lane.b32.xlu0 %v475, 127
        %v492 = vpop.permute.xlu0 %491
        %493 = vrot.lane.b32.xlu0 %v476, 127
        %v494 = vpop.permute.xlu0 %493
        %495 = vrot.lane.b32.xlu0 %v477, 127
        %v496 = vpop.permute.xlu0 %495
        %497 = vrot.lane.b32.xlu0 %v478, 127
        %v498 = vpop.permute.xlu0 %497
        %499 = vrot.lane.b32.xlu0 %v479, 127
        %v500 = vpop.permute.xlu0 %499
        %501 = vrot.lane.b32.xlu0 %v480, 127
        %v502 = vpop.permute.xlu0 %501
        %503 = vrot.lane.b32.xlu0 %v481, 127
        %v504 = vpop.permute.xlu0 %503
        %505 = vrot.lane.b32.xlu0 %v482, 127
        %v506 = vpop.permute.xlu0 %505
        %515 = vrot.lane.b32.xlu0 %v475, 1
        %v516 = vpop.permute.xlu0 %515
        %517 = vrot.lane.b32.xlu0 %v476, 1
        %v518 = vpop.permute.xlu0 %517
        %519 = vrot.lane.b32.xlu0 %v477, 1
        %v520 = vpop.permute.xlu0 %519
        %521 = vrot.lane.b32.xlu0 %v478, 1
        %v522 = vpop.permute.xlu0 %521
        %523 = vrot.lane.b32.xlu0 %v479, 1
        %v524 = vpop.permute.xlu0 %523
        %525 = vrot.lane.b32.xlu0 %v480, 1
        %v526 = vpop.permute.xlu0 %525
        %527 = vrot.lane.b32.xlu0 %v481, 1
        %v528 = vpop.permute.xlu0 %527
        %529 = vrot.lane.b32.xlu0 %v482, 1
        %v530 = vpop.permute.xlu0 %529
        %v539 = vsel %vm361, %v492, %v516
        %v540 = vsel %vm361, %v494, %v518
        %v541 = vsel %vm361, %v496, %v520
        %v542 = vsel %vm361, %v498, %v522
        %v543 = vsel %vm361, %v500, %v524
        %v544 = vsel %vm361, %v502, %v526
        %v545 = vsel %vm361, %v504, %v528
        %v546 = vsel %vm361, %v506, %v530
        %v547 = vsel %vm370, %v492, %v516
        %v548 = vsel %vm370, %v494, %v518
        %v549 = vsel %vm370, %v496, %v520
        %v550 = vsel %vm370, %v498, %v522
        %v551 = vsel %vm370, %v500, %v524
        %v552 = vsel %vm370, %v502, %v526
        %v553 = vsel %vm370, %v504, %v528
        %v554 = vsel %vm370, %v506, %v530
        %v555 = vadd.f32 %v539, %v475
        %v556 = vadd.f32 %v540, %v476
        %v557 = vadd.f32 %v541, %v477
        %v558 = vadd.f32 %v542, %v478
        %v559 = vadd.f32 %v543, %v479
        %v560 = vadd.f32 %v544, %v480
        %v561 = vadd.f32 %v545, %v481
        %v562 = vadd.f32 %v546, %v482
        %v563 = vadd.f32 %v555, %v547
        %v564 = vadd.f32 %v556, %v548
        %v565 = vadd.f32 %v557, %v549
        %v566 = vadd.f32 %v558, %v550
        %v567 = vadd.f32 %v559, %v551
        %v568 = vadd.f32 %v560, %v552
        %v569 = vadd.f32 %v561, %v553
        %v570 = vadd.f32 %v562, %v554
        %v571 = vmul.f32 %v563, 0.11111111
        %v572 = vmul.f32 %v564, 0.11111111
        %v573 = vmul.f32 %v565, 0.11111111
        %v574 = vmul.f32 %v566, 0.11111111
        %v575 = vmul.f32 %v567, 0.11111111
        %v576 = vmul.f32 %v568, 0.11111111
        %v577 = vmul.f32 %v569, 0.11111111
        %v578 = vmul.f32 %v570, 0.11111111
        %v579 = vmul.f32 %v395, %v395
        %v580 = vmul.f32 %v396, %v396
        %v581 = vmul.f32 %v397, %v397
        %v582 = vmul.f32 %v398, %v398
        %v583 = vmul.f32 %v399, %v399
        %v584 = vmul.f32 %v400, %v400
        %v585 = vmul.f32 %v401, %v401
        %v586 = vmul.f32 %v402, %v402
        %v587 = vmul.f32 %v571, %v571
        %v588 = vmul.f32 %v572, %v572
        %v589 = vmul.f32 %v573, %v573
        %v590 = vmul.f32 %v574, %v574
        %v591 = vmul.f32 %v575, %v575
        %v592 = vmul.f32 %v576, %v576
        %v593 = vmul.f32 %v577, %v577
        %v594 = vmul.f32 %v578, %v578
        %v595 = vmul.f32 %v395, %v571
        %v596 = vmul.f32 %v396, %v572
        %v597 = vmul.f32 %v397, %v573
        %v598 = vmul.f32 %v398, %v574
        %v599 = vmul.f32 %v399, %v575
        %v600 = vmul.f32 %v400, %v576
        %v601 = vmul.f32 %v401, %v577
        %v602 = vmul.f32 %v402, %v578
        %v603 = vmul.f32 %v207, %v207
        %v604 = vmul.f32 %v208, %v208
        %v605 = vmul.f32 %v209, %v209
        %v606 = vmul.f32 %v210, %v210
        %v607 = vmul.f32 %v211, %v211
        %v608 = vmul.f32 %v212, %v212
        %v609 = vmul.f32 %v213, %v213
        %v610 = vmul.f32 %v214, %v214
        %v615 = vrot.slane %v603, 1
        %v616 = vrot.slane %v605, 1
        %v617 = vrot.slane %v607, 1
        %v618 = vrot.slane %v609, 1
        %v627 = vrot.slane %v603, 7
        %v628 = vrot.slane %v604, 7
        %v629 = vsel %vm239, %v627, %v628
        %v630 = vrot.slane %v605, 7
        %v631 = vrot.slane %v606, 7
        %v632 = vsel %vm239, %v630, %v631
        %v633 = vrot.slane %v607, 7
        %v634 = vrot.slane %v608, 7
        %v635 = vsel %vm239, %v633, %v634
        %v636 = vrot.slane %v609, 7
        %v637 = vrot.slane %v610, 7
        %v638 = vsel %vm239, %v636, %v637
        %v647 = vsel %vm239, %v615, %v627
        %v648 = vsel %vm239, %v616, %v630
        %v649 = vsel %vm239, %v617, %v633
        %v650 = vsel %vm239, %v618, %v636
        %v651 = vrot.slane %v604, 1
        %v652 = vsel %vm264, %v615, %v651
        %v653 = vrot.slane %v606, 1
        %v654 = vsel %vm264, %v616, %v653
        %v655 = vrot.slane %v608, 1
        %v656 = vsel %vm264, %v617, %v655
        %v657 = vrot.slane %v610, 1
        %v658 = vsel %vm264, %v618, %v657
        %v671 = vsel %vm264, %v651, %v628
        %v672 = vsel %vm264, %v653, %v631
        %v673 = vsel %vm264, %v655, %v634
        %v674 = vsel %vm264, %v657, %v637
        %v675 = vadd.f32 %v647, %v603
        %v676 = vadd.f32 %v629, %v604
        %v677 = vadd.f32 %v648, %v605
        %v678 = vadd.f32 %v632, %v606
        %v679 = vadd.f32 %v649, %v607
        %v680 = vadd.f32 %v635, %v608
        %v681 = vadd.f32 %v650, %v609
        %v682 = vadd.f32 %v638, %v610
        %v683 = vadd.f32 %v675, %v652
        %v684 = vadd.f32 %v676, %v671
        %v685 = vadd.f32 %v677, %v654
        %v686 = vadd.f32 %v678, %v672
        %v687 = vadd.f32 %v679, %v656
        %v688 = vadd.f32 %v680, %v673
        %v689 = vadd.f32 %v681, %v658
        %v690 = vadd.f32 %v682, %v674
        %699 = vrot.lane.b32.xlu0 %v683, 127
        %v700 = vpop.permute.xlu0 %699
        %701 = vrot.lane.b32.xlu0 %v684, 127
        %v702 = vpop.permute.xlu0 %701
        %703 = vrot.lane.b32.xlu0 %v685, 127
        %v704 = vpop.permute.xlu0 %703
        %705 = vrot.lane.b32.xlu0 %v686, 127
        %v706 = vpop.permute.xlu0 %705
        %707 = vrot.lane.b32.xlu0 %v687, 127
        %v708 = vpop.permute.xlu0 %707
        %709 = vrot.lane.b32.xlu0 %v688, 127
        %v710 = vpop.permute.xlu0 %709
        %711 = vrot.lane.b32.xlu0 %v689, 127
        %v712 = vpop.permute.xlu0 %711
        %713 = vrot.lane.b32.xlu0 %v690, 127
        %v714 = vpop.permute.xlu0 %713
        %723 = vrot.lane.b32.xlu0 %v683, 1
        %v724 = vpop.permute.xlu0 %723
        %725 = vrot.lane.b32.xlu0 %v684, 1
        %v726 = vpop.permute.xlu0 %725
        %727 = vrot.lane.b32.xlu0 %v685, 1
        %v728 = vpop.permute.xlu0 %727
        %729 = vrot.lane.b32.xlu0 %v686, 1
        %v730 = vpop.permute.xlu0 %729
        %731 = vrot.lane.b32.xlu0 %v687, 1
        %v732 = vpop.permute.xlu0 %731
        %733 = vrot.lane.b32.xlu0 %v688, 1
        %v734 = vpop.permute.xlu0 %733
        %735 = vrot.lane.b32.xlu0 %v689, 1
        %v736 = vpop.permute.xlu0 %735
        %737 = vrot.lane.b32.xlu0 %v690, 1
        %v738 = vpop.permute.xlu0 %737
        %v747 = vsel %vm361, %v700, %v724
        %v748 = vsel %vm361, %v702, %v726
        %v749 = vsel %vm361, %v704, %v728
        %v750 = vsel %vm361, %v706, %v730
        %v751 = vsel %vm361, %v708, %v732
        %v752 = vsel %vm361, %v710, %v734
        %v753 = vsel %vm361, %v712, %v736
        %v754 = vsel %vm361, %v714, %v738
        %v755 = vsel %vm370, %v700, %v724
        %v756 = vsel %vm370, %v702, %v726
        %v757 = vsel %vm370, %v704, %v728
        %v758 = vsel %vm370, %v706, %v730
        %v759 = vsel %vm370, %v708, %v732
        %v760 = vsel %vm370, %v710, %v734
        %v761 = vsel %vm370, %v712, %v736
        %v762 = vsel %vm370, %v714, %v738
        %v763 = vadd.f32 %v747, %v683
        %v764 = vadd.f32 %v748, %v684
        %v765 = vadd.f32 %v749, %v685
        %v766 = vadd.f32 %v750, %v686
        %v767 = vadd.f32 %v751, %v687
        %v768 = vadd.f32 %v752, %v688
        %v769 = vadd.f32 %v753, %v689
        %v770 = vadd.f32 %v754, %v690
        %v771 = vadd.f32 %v763, %v755
        %v772 = vadd.f32 %v764, %v756
        %v773 = vadd.f32 %v765, %v757
        %v774 = vadd.f32 %v766, %v758
        %v775 = vadd.f32 %v767, %v759
        %v776 = vadd.f32 %v768, %v760
        %v777 = vadd.f32 %v769, %v761
        %v778 = vadd.f32 %v770, %v762
        %v779 = vmul.f32 %v771, 0.11111111
        %v780 = vmul.f32 %v772, 0.11111111
        %v781 = vmul.f32 %v773, 0.11111111
        %v782 = vmul.f32 %v774, 0.11111111
        %v783 = vmul.f32 %v775, 0.11111111
        %v784 = vmul.f32 %v776, 0.11111111
        %v785 = vmul.f32 %v777, 0.11111111
        %v786 = vmul.f32 %v778, 0.11111111
        %v787 = vsub.f32 %v779, %v579
        %v788 = vsub.f32 %v780, %v580
        %v789 = vsub.f32 %v781, %v581
        %v790 = vsub.f32 %v782, %v582
        %v791 = vsub.f32 %v783, %v583
        %v792 = vsub.f32 %v784, %v584
        %v793 = vsub.f32 %v785, %v585
        %v794 = vsub.f32 %v786, %v586
        %v795 = vmul.f32 %v215, %v215
        %v796 = vmul.f32 %v216, %v216
        %v797 = vmul.f32 %v217, %v217
        %v798 = vmul.f32 %v218, %v218
        %v799 = vmul.f32 %v219, %v219
        %v800 = vmul.f32 %v220, %v220
        %v801 = vmul.f32 %v221, %v221
        %v802 = vmul.f32 %v222, %v222
        %v807 = vrot.slane %v795, 1
        %v808 = vrot.slane %v797, 1
        %v809 = vrot.slane %v799, 1
        %v810 = vrot.slane %v801, 1
        %v819 = vrot.slane %v795, 7
        %v820 = vrot.slane %v796, 7
        %v821 = vsel %vm239, %v819, %v820
        %v822 = vrot.slane %v797, 7
        %v823 = vrot.slane %v798, 7
        %v824 = vsel %vm239, %v822, %v823
        %v825 = vrot.slane %v799, 7
        %v826 = vrot.slane %v800, 7
        %v827 = vsel %vm239, %v825, %v826
        %v828 = vrot.slane %v801, 7
        %v829 = vrot.slane %v802, 7
        %v830 = vsel %vm239, %v828, %v829
        %v839 = vsel %vm239, %v807, %v819
        %v840 = vsel %vm239, %v808, %v822
        %v841 = vsel %vm239, %v809, %v825
        %v842 = vsel %vm239, %v810, %v828
        %v843 = vrot.slane %v796, 1
        %v844 = vsel %vm264, %v807, %v843
        %v845 = vrot.slane %v798, 1
        %v846 = vsel %vm264, %v808, %v845
        %v847 = vrot.slane %v800, 1
        %v848 = vsel %vm264, %v809, %v847
        %v849 = vrot.slane %v802, 1
        %v850 = vsel %vm264, %v810, %v849
        %v863 = vsel %vm264, %v843, %v820
        %v864 = vsel %vm264, %v845, %v823
        %v865 = vsel %vm264, %v847, %v826
        %v866 = vsel %vm264, %v849, %v829
        %v867 = vadd.f32 %v839, %v795
        %v868 = vadd.f32 %v821, %v796
        %v869 = vadd.f32 %v840, %v797
        %v870 = vadd.f32 %v824, %v798
        %v871 = vadd.f32 %v841, %v799
        %v872 = vadd.f32 %v827, %v800
        %v873 = vadd.f32 %v842, %v801
        %v874 = vadd.f32 %v830, %v802
        %v875 = vadd.f32 %v867, %v844
        %v876 = vadd.f32 %v868, %v863
        %v877 = vadd.f32 %v869, %v846
        %v878 = vadd.f32 %v870, %v864
        %v879 = vadd.f32 %v871, %v848
        %v880 = vadd.f32 %v872, %v865
        %v881 = vadd.f32 %v873, %v850
        %v882 = vadd.f32 %v874, %v866
        %891 = vrot.lane.b32.xlu0 %v875, 127
        %v892 = vpop.permute.xlu0 %891
        %893 = vrot.lane.b32.xlu0 %v876, 127
        %v894 = vpop.permute.xlu0 %893
        %895 = vrot.lane.b32.xlu0 %v877, 127
        %v896 = vpop.permute.xlu0 %895
        %897 = vrot.lane.b32.xlu0 %v878, 127
        %v898 = vpop.permute.xlu0 %897
        %899 = vrot.lane.b32.xlu0 %v879, 127
        %v900 = vpop.permute.xlu0 %899
        %901 = vrot.lane.b32.xlu0 %v880, 127
        %v902 = vpop.permute.xlu0 %901
        %903 = vrot.lane.b32.xlu0 %v881, 127
        %v904 = vpop.permute.xlu0 %903
        %905 = vrot.lane.b32.xlu0 %v882, 127
        %v906 = vpop.permute.xlu0 %905
        %915 = vrot.lane.b32.xlu0 %v875, 1
        %v916 = vpop.permute.xlu0 %915
        %917 = vrot.lane.b32.xlu0 %v876, 1
        %v918 = vpop.permute.xlu0 %917
        %919 = vrot.lane.b32.xlu0 %v877, 1
        %v920 = vpop.permute.xlu0 %919
        %921 = vrot.lane.b32.xlu0 %v878, 1
        %v922 = vpop.permute.xlu0 %921
        %923 = vrot.lane.b32.xlu0 %v879, 1
        %v924 = vpop.permute.xlu0 %923
        %925 = vrot.lane.b32.xlu0 %v880, 1
        %v926 = vpop.permute.xlu0 %925
        %927 = vrot.lane.b32.xlu0 %v881, 1
        %v928 = vpop.permute.xlu0 %927
        %929 = vrot.lane.b32.xlu0 %v882, 1
        %v930 = vpop.permute.xlu0 %929
        %v939 = vsel %vm361, %v892, %v916
        %v940 = vsel %vm361, %v894, %v918
        %v941 = vsel %vm361, %v896, %v920
        %v942 = vsel %vm361, %v898, %v922
        %v943 = vsel %vm361, %v900, %v924
        %v944 = vsel %vm361, %v902, %v926
        %v945 = vsel %vm361, %v904, %v928
        %v946 = vsel %vm361, %v906, %v930
        %v947 = vsel %vm370, %v892, %v916
        %v948 = vsel %vm370, %v894, %v918
        %v949 = vsel %vm370, %v896, %v920
        %v950 = vsel %vm370, %v898, %v922
        %v951 = vsel %vm370, %v900, %v924
        %v952 = vsel %vm370, %v902, %v926
        %v953 = vsel %vm370, %v904, %v928
        %v954 = vsel %vm370, %v906, %v930
        %v955 = vadd.f32 %v939, %v875
        %v956 = vadd.f32 %v940, %v876
        %v957 = vadd.f32 %v941, %v877
        %v958 = vadd.f32 %v942, %v878
        %v959 = vadd.f32 %v943, %v879
        %v960 = vadd.f32 %v944, %v880
        %v961 = vadd.f32 %v945, %v881
        %v962 = vadd.f32 %v946, %v882
        %v963 = vadd.f32 %v955, %v947
        %v964 = vadd.f32 %v956, %v948
        %v965 = vadd.f32 %v957, %v949
        %v966 = vadd.f32 %v958, %v950
        %v967 = vadd.f32 %v959, %v951
        %v968 = vadd.f32 %v960, %v952
        %v969 = vadd.f32 %v961, %v953
        %v970 = vadd.f32 %v962, %v954
        %v971 = vmul.f32 %v963, 0.11111111
        %v972 = vmul.f32 %v964, 0.11111111
        %v973 = vmul.f32 %v965, 0.11111111
        %v974 = vmul.f32 %v966, 0.11111111
        %v975 = vmul.f32 %v967, 0.11111111
        %v976 = vmul.f32 %v968, 0.11111111
        %v977 = vmul.f32 %v969, 0.11111111
        %v978 = vmul.f32 %v970, 0.11111111
        %v979 = vsub.f32 %v971, %v587
        %v980 = vsub.f32 %v972, %v588
        %v981 = vsub.f32 %v973, %v589
        %v982 = vsub.f32 %v974, %v590
        %v983 = vsub.f32 %v975, %v591
        %v984 = vsub.f32 %v976, %v592
        %v985 = vsub.f32 %v977, %v593
        %v986 = vsub.f32 %v978, %v594
        %v987 = vmul.f32 %v207, %v215
        %v988 = vmul.f32 %v208, %v216
        %v989 = vmul.f32 %v209, %v217
        %v990 = vmul.f32 %v210, %v218
        %v991 = vmul.f32 %v211, %v219
        %v992 = vmul.f32 %v212, %v220
        %v993 = vmul.f32 %v213, %v221
        %v994 = vmul.f32 %v214, %v222
        %v999 = vrot.slane %v987, 1
        %v1000 = vrot.slane %v989, 1
        %v1001 = vrot.slane %v991, 1
        %v1002 = vrot.slane %v993, 1
        %v1011 = vrot.slane %v987, 7
        %v1012 = vrot.slane %v988, 7
        %v1013 = vsel %vm239, %v1011, %v1012
        %v1014 = vrot.slane %v989, 7
        %v1015 = vrot.slane %v990, 7
        %v1016 = vsel %vm239, %v1014, %v1015
        %v1017 = vrot.slane %v991, 7
        %v1018 = vrot.slane %v992, 7
        %v1019 = vsel %vm239, %v1017, %v1018
        %v1020 = vrot.slane %v993, 7
        %v1021 = vrot.slane %v994, 7
        %v1022 = vsel %vm239, %v1020, %v1021
        %v1031 = vsel %vm239, %v999, %v1011
        %v1032 = vsel %vm239, %v1000, %v1014
        %v1033 = vsel %vm239, %v1001, %v1017
        %v1034 = vsel %vm239, %v1002, %v1020
        %v1035 = vrot.slane %v988, 1
        %v1036 = vsel %vm264, %v999, %v1035
        %v1037 = vrot.slane %v990, 1
        %v1038 = vsel %vm264, %v1000, %v1037
        %v1039 = vrot.slane %v992, 1
        %v1040 = vsel %vm264, %v1001, %v1039
        %v1041 = vrot.slane %v994, 1
        %v1042 = vsel %vm264, %v1002, %v1041
        %v1055 = vsel %vm264, %v1035, %v1012
        %v1056 = vsel %vm264, %v1037, %v1015
        %v1057 = vsel %vm264, %v1039, %v1018
        %v1058 = vsel %vm264, %v1041, %v1021
        %v1059 = vadd.f32 %v1031, %v987
        %v1060 = vadd.f32 %v1013, %v988
        %v1061 = vadd.f32 %v1032, %v989
        %v1062 = vadd.f32 %v1016, %v990
        %v1063 = vadd.f32 %v1033, %v991
        %v1064 = vadd.f32 %v1019, %v992
        %v1065 = vadd.f32 %v1034, %v993
        %v1066 = vadd.f32 %v1022, %v994
        %v1067 = vadd.f32 %v1059, %v1036
        %v1068 = vadd.f32 %v1060, %v1055
        %v1069 = vadd.f32 %v1061, %v1038
        %v1070 = vadd.f32 %v1062, %v1056
        %v1071 = vadd.f32 %v1063, %v1040
        %v1072 = vadd.f32 %v1064, %v1057
        %v1073 = vadd.f32 %v1065, %v1042
        %v1074 = vadd.f32 %v1066, %v1058
        %1083 = vrot.lane.b32.xlu0 %v1067, 127
        %v1084 = vpop.permute.xlu0 %1083
        %1085 = vrot.lane.b32.xlu0 %v1068, 127
        %v1086 = vpop.permute.xlu0 %1085
        %1087 = vrot.lane.b32.xlu0 %v1069, 127
        %v1088 = vpop.permute.xlu0 %1087
        %1089 = vrot.lane.b32.xlu0 %v1070, 127
        %v1090 = vpop.permute.xlu0 %1089
        %1091 = vrot.lane.b32.xlu0 %v1071, 127
        %v1092 = vpop.permute.xlu0 %1091
        %1093 = vrot.lane.b32.xlu0 %v1072, 127
        %v1094 = vpop.permute.xlu0 %1093
        %1095 = vrot.lane.b32.xlu0 %v1073, 127
        %v1096 = vpop.permute.xlu0 %1095
        %1097 = vrot.lane.b32.xlu0 %v1074, 127
        %v1098 = vpop.permute.xlu0 %1097
        %1107 = vrot.lane.b32.xlu0 %v1067, 1
        %v1108 = vpop.permute.xlu0 %1107
        %1109 = vrot.lane.b32.xlu0 %v1068, 1
        %v1110 = vpop.permute.xlu0 %1109
        %1111 = vrot.lane.b32.xlu0 %v1069, 1
        %v1112 = vpop.permute.xlu0 %1111
        %1113 = vrot.lane.b32.xlu0 %v1070, 1
        %v1114 = vpop.permute.xlu0 %1113
        %1115 = vrot.lane.b32.xlu0 %v1071, 1
        %v1116 = vpop.permute.xlu0 %1115
        %1117 = vrot.lane.b32.xlu0 %v1072, 1
        %v1118 = vpop.permute.xlu0 %1117
        %1119 = vrot.lane.b32.xlu0 %v1073, 1
        %v1120 = vpop.permute.xlu0 %1119
        %1121 = vrot.lane.b32.xlu0 %v1074, 1
        %v1122 = vpop.permute.xlu0 %1121
        %v1131 = vsel %vm361, %v1084, %v1108
        %v1132 = vsel %vm361, %v1086, %v1110
        %v1133 = vsel %vm361, %v1088, %v1112
        %v1134 = vsel %vm361, %v1090, %v1114
        %v1135 = vsel %vm361, %v1092, %v1116
        %v1136 = vsel %vm361, %v1094, %v1118
        %v1137 = vsel %vm361, %v1096, %v1120
        %v1138 = vsel %vm361, %v1098, %v1122
        %v1139 = vsel %vm370, %v1084, %v1108
        %v1140 = vsel %vm370, %v1086, %v1110
        %v1141 = vsel %vm370, %v1088, %v1112
        %v1142 = vsel %vm370, %v1090, %v1114
        %v1143 = vsel %vm370, %v1092, %v1116
        %v1144 = vsel %vm370, %v1094, %v1118
        %v1145 = vsel %vm370, %v1096, %v1120
        %v1146 = vsel %vm370, %v1098, %v1122
        %v1147 = vadd.f32 %v1131, %v1067
        %v1148 = vadd.f32 %v1132, %v1068
        %v1149 = vadd.f32 %v1133, %v1069
        %v1150 = vadd.f32 %v1134, %v1070
        %v1151 = vadd.f32 %v1135, %v1071
        %v1152 = vadd.f32 %v1136, %v1072
        %v1153 = vadd.f32 %v1137, %v1073
        %v1154 = vadd.f32 %v1138, %v1074
        %v1155 = vadd.f32 %v1147, %v1139
        %v1156 = vadd.f32 %v1148, %v1140
        %v1157 = vadd.f32 %v1149, %v1141
        %v1158 = vadd.f32 %v1150, %v1142
        %v1159 = vadd.f32 %v1151, %v1143
        %v1160 = vadd.f32 %v1152, %v1144
        %v1161 = vadd.f32 %v1153, %v1145
        %v1162 = vadd.f32 %v1154, %v1146
        %v1163 = vmul.f32 %v1155, 0.11111111
        %v1164 = vmul.f32 %v1156, 0.11111111
        %v1165 = vmul.f32 %v1157, 0.11111111
        %v1166 = vmul.f32 %v1158, 0.11111111
        %v1167 = vmul.f32 %v1159, 0.11111111
        %v1168 = vmul.f32 %v1160, 0.11111111
        %v1169 = vmul.f32 %v1161, 0.11111111
        %v1170 = vmul.f32 %v1162, 0.11111111
        %v1171 = vsub.f32 %v1163, %v595
        %v1172 = vsub.f32 %v1164, %v596
        %v1173 = vsub.f32 %v1165, %v597
        %v1174 = vsub.f32 %v1166, %v598
        %v1175 = vsub.f32 %v1167, %v599
        %v1176 = vsub.f32 %v1168, %v600
        %v1177 = vsub.f32 %v1169, %v601
        %v1178 = vsub.f32 %v1170, %v602
        %v1179 = vmul.f32 %v595, 2.0
        %v1180 = vmul.f32 %v596, 2.0
        %v1181 = vmul.f32 %v597, 2.0
        %v1182 = vmul.f32 %v598, 2.0
        %v1183 = vmul.f32 %v599, 2.0
        %v1184 = vmul.f32 %v600, 2.0
        %v1185 = vmul.f32 %v601, 2.0
        %v1186 = vmul.f32 %v602, 2.0
        %v1187 = vadd.f32 %v1179, 0.0001
        %v1188 = vadd.f32 %v1180, 0.0001
        %v1189 = vadd.f32 %v1181, 0.0001
        %v1190 = vadd.f32 %v1182, 0.0001
        %v1191 = vadd.f32 %v1183, 0.0001
        %v1192 = vadd.f32 %v1184, 0.0001
        %v1193 = vadd.f32 %v1185, 0.0001
        %v1194 = vadd.f32 %v1186, 0.0001
        %v1195 = vmul.f32 %v1171, 2.0
        %v1196 = vmul.f32 %v1172, 2.0
        %v1197 = vmul.f32 %v1173, 2.0
        %v1198 = vmul.f32 %v1174, 2.0
        %v1199 = vmul.f32 %v1175, 2.0
        %v1200 = vmul.f32 %v1176, 2.0
        %v1201 = vmul.f32 %v1177, 2.0
        %v1202 = vmul.f32 %v1178, 2.0
        %v1203 = vadd.f32 %v1195, 0.0009
        %v1204 = vadd.f32 %v1196, 0.0009
        %v1205 = vadd.f32 %v1197, 0.0009
        %v1206 = vadd.f32 %v1198, 0.0009
        %v1207 = vadd.f32 %v1199, 0.0009
        %v1208 = vadd.f32 %v1200, 0.0009
        %v1209 = vadd.f32 %v1201, 0.0009
        %v1210 = vadd.f32 %v1202, 0.0009
        %v1211 = vmul.f32 %v1187, %v1203
        %v1212 = vmul.f32 %v1188, %v1204
        %v1213 = vmul.f32 %v1189, %v1205
        %v1214 = vmul.f32 %v1190, %v1206
        %v1215 = vmul.f32 %v1191, %v1207
        %v1216 = vmul.f32 %v1192, %v1208
        %v1217 = vmul.f32 %v1193, %v1209
        %v1218 = vmul.f32 %v1194, %v1210
        %v1219 = vadd.f32 %v579, %v587
        %v1220 = vadd.f32 %v580, %v588
        %v1221 = vadd.f32 %v581, %v589
        %v1222 = vadd.f32 %v582, %v590
        %v1223 = vadd.f32 %v583, %v591
        %v1224 = vadd.f32 %v584, %v592
        %v1225 = vadd.f32 %v585, %v593
        %v1226 = vadd.f32 %v586, %v594
        %v1227 = vadd.f32 %v1219, 0.0001
        %v1228 = vadd.f32 %v1220, 0.0001
        %v1229 = vadd.f32 %v1221, 0.0001
        %v1230 = vadd.f32 %v1222, 0.0001
        %v1231 = vadd.f32 %v1223, 0.0001
        %v1232 = vadd.f32 %v1224, 0.0001
        %v1233 = vadd.f32 %v1225, 0.0001
        %v1234 = vadd.f32 %v1226, 0.0001
        %v1235 = vadd.f32 %v787, %v979
        %v1236 = vadd.f32 %v788, %v980
        %v1237 = vadd.f32 %v789, %v981
        %v1238 = vadd.f32 %v790, %v982
        %v1239 = vadd.f32 %v791, %v983
        %v1240 = vadd.f32 %v792, %v984
        %v1241 = vadd.f32 %v793, %v985
        %v1242 = vadd.f32 %v794, %v986
        %v1243 = vadd.f32 %v1235, 0.0009
        %v1244 = vadd.f32 %v1236, 0.0009
        %v1245 = vadd.f32 %v1237, 0.0009
        %v1246 = vadd.f32 %v1238, 0.0009
        %v1247 = vadd.f32 %v1239, 0.0009
        %v1248 = vadd.f32 %v1240, 0.0009
        %v1249 = vadd.f32 %v1241, 0.0009
        %v1250 = vadd.f32 %v1242, 0.0009
        %v1251 = vmul.f32 %v1227, %v1243
        %v1252 = vmul.f32 %v1228, %v1244
        %v1253 = vmul.f32 %v1229, %v1245
        %v1254 = vmul.f32 %v1230, %v1246
        %v1255 = vmul.f32 %v1231, %v1247
        %v1256 = vmul.f32 %v1232, %v1248
        %v1257 = vmul.f32 %v1233, %v1249
        %v1258 = vmul.f32 %v1234, %v1250
        %v1259 = vrcp.pop %v1251
        %v1260 = vrcp.pop %v1252
        %v1261 = vrcp.pop %v1253
        %v1262 = vrcp.pop %v1254
        %v1263 = vrcp.pop %v1255
        %v1264 = vrcp.pop %v1256
        %v1265 = vrcp.pop %v1257
        %v1266 = vrcp.pop %v1258
        %v1267 = vmul.f32 %v1251, %v1259
        %v1268 = vmul.f32 %v1252, %v1260
        %v1269 = vmul.f32 %v1253, %v1261
        %v1270 = vmul.f32 %v1254, %v1262
        %v1271 = vmul.f32 %v1255, %v1263
        %v1272 = vmul.f32 %v1256, %v1264
        %v1273 = vmul.f32 %v1257, %v1265
        %v1274 = vmul.f32 %v1258, %v1266
        %v1275 = vsub.f32 2.0, %v1267
        %v1276 = vsub.f32 2.0, %v1268
        %v1277 = vsub.f32 2.0, %v1269
        %v1278 = vsub.f32 2.0, %v1270
        %v1279 = vsub.f32 2.0, %v1271
        %v1280 = vsub.f32 2.0, %v1272
        %v1281 = vsub.f32 2.0, %v1273
        %v1282 = vsub.f32 2.0, %v1274
        %v1283 = vmul.f32 %v1259, %v1275
        %v1284 = vmul.f32 %v1260, %v1276
        %v1285 = vmul.f32 %v1261, %v1277
        %v1286 = vmul.f32 %v1262, %v1278
        %v1287 = vmul.f32 %v1263, %v1279
        %v1288 = vmul.f32 %v1264, %v1280
        %v1289 = vmul.f32 %v1265, %v1281
        %v1290 = vmul.f32 %v1266, %v1282
        %v1291 = vmul.f32 %v1211, %v1283
        %v1292 = vmul.f32 %v1212, %v1284
        %v1293 = vmul.f32 %v1213, %v1285
        %v1294 = vmul.f32 %v1214, %v1286
        %v1295 = vmul.f32 %v1215, %v1287
        %v1296 = vmul.f32 %v1216, %v1288
        %v1297 = vmul.f32 %v1217, %v1289
        %v1298 = vmul.f32 %v1218, %v1290
        %v1299 = vsub.f32 1.0, %v1291
        %v1300 = vsub.f32 1.0, %v1292
        %v1301 = vsub.f32 1.0, %v1293
        %v1302 = vsub.f32 1.0, %v1294
        %v1303 = vsub.f32 1.0, %v1295
        %v1304 = vsub.f32 1.0, %v1296
        %v1305 = vsub.f32 1.0, %v1297
        %v1306 = vsub.f32 1.0, %v1298
        %v1307 = vmul.f32 %v1299, 0.5
        %v1308 = vmul.f32 %v1300, 0.5
        %v1309 = vmul.f32 %v1301, 0.5
        %v1310 = vmul.f32 %v1302, 0.5
        %v1311 = vmul.f32 %v1303, 0.5
        %v1312 = vmul.f32 %v1304, 0.5
        %v1313 = vmul.f32 %v1305, 0.5
        %v1314 = vmul.f32 %v1306, 0.5
        %v1315 = vmax.f32 %v1307, 0.0
        %v1316 = vmax.f32 %v1308, 0.0
        %v1317 = vmax.f32 %v1309, 0.0
        %v1318 = vmax.f32 %v1310, 0.0
        %v1319 = vmax.f32 %v1311, 0.0
        %v1320 = vmax.f32 %v1312, 0.0
        %v1321 = vmax.f32 %v1313, 0.0
        %v1322 = vmax.f32 %v1314, 0.0
        %v1323 = vmin.f32 %v1315, 1.0
        %v1324 = vmin.f32 %v1316, 1.0
        %v1325 = vmin.f32 %v1317, 1.0
        %v1326 = vmin.f32 %v1318, 1.0
        %v1327 = vmin.f32 %v1319, 1.0
        %v1328 = vmin.f32 %v1320, 1.0
        %v1329 = vmin.f32 %v1321, 1.0
        %v1330 = vmin.f32 %v1322, 1.0
        %vm1331 = vcmask 130048
        %1332 = vst.msk [vmem:[%s203] sm:$0xff] %vm1331, %v1323
        %1333 = vst.msk [vmem:[%s203 + $0x8] sm:$0xff] %vm1331, %v1324
        %1334 = vst.msk [vmem:[%s203 + $0x10] sm:$0xff] %vm1331, %v1325
        %1335 = vst.msk [vmem:[%s203 + $0x18] sm:$0xff] %vm1331, %v1326
        %1336 = vst.msk [vmem:[%s203 + $0x20] sm:$0xff] %vm1331, %v1327
        %1337 = vst.msk [vmem:[%s203 + $0x28] sm:$0xff] %vm1331, %v1328
        %1338 = vst.msk [vmem:[%s203 + $0x30] sm:$0xff] %vm1331, %v1329
        %1339 = vst.msk [vmem:[%s203 + $0x38] sm:$0xff] %vm1331, %v1330
        %s1340 = sand.u32 %s82, 1
        %s1341 = scalar_lea.sflag [#allocation4], %s1340
        %s1342 = sand.u32 %s82, 1
        %s1343 = smul.addr %s1342, 64
        %s1344 = scalar_lea.vmem [#allocation7], %s1343
        // Predicated region
        $region37: #{ssim_pallas.1} parent=27 // pred_check
          %p1345 = pneg %p92
        $region38: #{ssim_pallas.1} parent=27 // pred_check_branch
          %1347 = sbr.rel (%p1345) target = $region40
        $region39: #{ssim_pallas.1} parent=27 // pred_region
          %s1348 = smul.u32 4, %s22
          %s1350 = ssub.s32 1024, 1024
          %1351 = vsyncadd %s1341, %s1350
          %s1352 = smul.addr %s1348, 2
          %s1353 = smul.addr %s1352, 128
          %s1354 = scalar_lea.hbm %s2, %s1353
          %s1355 = sshll.u32 %s1344, 4
          %s1356 = int_to_ptr.vmem [resolvable:$true] %s1355
          %1361 = dma.vmem_to_hbm [thread:$0]  %s1356, 1024, %s1354, %s1341, 128, 128, 8
        $region40: #{ssim_pallas.1} parent=27 // pred_fallthru
          _
      $region28: #{ssim_pallas.1} parent=5 // pred_fallthru
        _
      %p1362 = scmp.le.s32.totalorder 2, %s17
      // Predicated region
      $region41: #{ssim_pallas.1} parent=5 // pred_check
        %p1363 = pneg %p1362
      $region42: #{ssim_pallas.1} parent=5 // pred_check_branch
        %1365 = sbr.rel (%p1363) target = $region44
      $region43: #{ssim_pallas.1} parent=5 // pred_region
        %s1366 = ssub.s32 %s17, 2
        // Predicated region
        $region45: #{ssim_pallas.1} parent=43 // pred_check
          %p1367 = pneg %p98
        $region46: #{ssim_pallas.1} parent=43 // pred_check_branch
          %1369 = sbr.rel (%p1367) target = $region48
        $region47: #{ssim_pallas.1} parent=43 // pred_region
          %s1370 = sand.u32 %s83, 1
          %s1371 = scalar_lea.sflag [#allocation4], %s1370
          %s1372 = sand.u32 %s83, 1
          %s1373 = smul.addr %s1372, 64
          %s1374 = scalar_lea.vmem [#allocation7], %s1373
          %1375 = dma.done %s1371, 1024
        $region48: #{ssim_pallas.1} parent=43 // pred_fallthru
          _
      $region44: #{ssim_pallas.1} parent=5 // pred_fallthru
        _
    $region6: #{ssim_pallas.1} parent=1 // loop_footer
      %s21 = sadd.s32 1, %s17
    $region7: #{ssim_pallas.1} parent=1 // loop_footer_branch
      %16 = sbr.rel target = $region3
    $region8: #{ssim_pallas.1} parent=1 // loop_exit
      _
    %1376 = vsyncpa [#allocation3], 1
    %s1377 = scalar_lea.sflag [#allocation3], 1
    %1378 = vsyncpa %s1377, 1
    %1379 = vsyncpa [#allocation6], 1
    %s1380 = scalar_lea.sflag [#allocation6], 1
    %1381 = vsyncpa %s1380, 1
    %1382 = vsyncpa [#allocation4], 1
    %s1383 = scalar_lea.sflag [#allocation4], 1
    %1384 = vsyncpa %s1383, 1

</llo_original>
